<compile_context>
chip_gen: v6e
topology: v6e:2x2x1
jax: 0.10.0
libtpu: 0.0.40
codegen_flags: <defaults>
</compile_context>

<pallas_src>
import functools

import jax
import jax.numpy as jnp
import numpy as np
from jax.experimental import pallas as pl
from jax.experimental.pallas import tpu as pltpu

MATMUL_DTYPE = jnp.bfloat16          # MXU operand dtype (f32 accumulate everywhere)
VMEM_LIMIT = 48 * 1024 * 1024        # above 16/32 MiB scoped defaults, < 64 MiB (v7x)
NEG_MASK = -1e4                      # Whisper's additive causal-mask value


def _pick_tile(n, candidates):
    """Largest candidate tile that evenly divides n, else the full extent."""
    for c in candidates:
        if c <= n and n % c == 0:
            return c
    return n


# ---------------------------------------------------------------------------
# Linear kernel:  y = x @ W^T + b   (PyTorch F.linear convention, W[out, in])
# ---------------------------------------------------------------------------
def _linear_kernel(x_ref, w_ref, b_ref, o_ref):
    x = x_ref[...].astype(MATMUL_DTYPE)
    w = w_ref[...].astype(MATMUL_DTYPE)
    acc = jax.lax.dot_general(                      # x @ w.T, f32 accumulate
        x, w, (((1,), (1,)), ((), ())),
        preferred_element_type=jnp.float32)
    o_ref[...] = acc + b_ref[...]


def linear(x2, w, b):
    """(N, Din) @ (Dout, Din)^T + (1, Dout) -> (N, Dout) f32, row-tiled."""
    n, d_in = x2.shape
    d_out = w.shape[0]
    tn = _pick_tile(n, (512, 256, 128, 64, 32, 16, 8))
    flops = 2 * n * d_in * d_out
    bytes_accessed = 4 * (n * d_in + d_out * d_in + d_out + n * d_out)
    return pl.pallas_call(
        _linear_kernel,
        out_shape=jax.ShapeDtypeStruct((n, d_out), jnp.float32),
        grid=(n // tn,),
        in_specs=[
            pl.BlockSpec((tn, d_in), lambda i: (i, 0)),
            pl.BlockSpec((d_out, d_in), lambda i: (0, 0)),
            pl.BlockSpec((1, d_out), lambda i: (0, 0)),
        ],
        out_specs=pl.BlockSpec((tn, d_out), lambda i: (i, 0)),
        compiler_params=pltpu.CompilerParams(
            dimension_semantics=("parallel",),
            vmem_limit_bytes=VMEM_LIMIT),
        cost_estimate=pl.CostEstimate(
            flops=flops, transcendentals=0, bytes_accessed=bytes_accessed),
    )(x2, w, b)


# ---------------------------------------------------------------------------
# Flash-style attention kernel (online softmax), also emits pre-softmax qk.
# ---------------------------------------------------------------------------
def _flash_body(q_ref, k_ref, v_ref, mask_add, wv_ref, qk_ref,
                m_sc, l_sc, acc_sc, *, scale, tq, tk, mask_mode):
    ki = pl.program_id(3)

    @pl.when(ki == 0)
    def _():
        m_sc[...] = jnp.full_like(m_sc, -jnp.inf)
        l_sc[...] = jnp.zeros_like(l_sc)
        acc_sc[...] = jnp.zeros_like(acc_sc)

    # Single scale application (hd**-0.5 on q only); f32 elementwise math.
    q = q_ref[...] * scale                         # (Tq, hd) f32
    k = k_ref[...]                                 # (Tk, hd) f32
    v = v_ref[...]                                 # (Tk, hd) f32

    s = jax.lax.dot_general(                       # q @ k^T  -> (Tq, Tk) f32
        q.astype(MATMUL_DTYPE), k.astype(MATMUL_DTYPE),
        (((1,), (1,)), ((), ())),
        preferred_element_type=jnp.float32)

    if mask_mode == "causal":
        # Generate the Whisper causal mask in-kernel: no (T, T) HBM traffic.
        qi = pl.program_id(2)
        row = qi * tq + jax.lax.broadcasted_iota(jnp.int32, (tq, tk), 0)
        col = ki * tk + jax.lax.broadcasted_iota(jnp.int32, (tq, tk), 1)
        s = s + jnp.where(col > row, jnp.float32(NEG_MASK), jnp.float32(0.0))
    elif mask_mode == "dense":
        s = s + mask_add

    # Pre-softmax logits (incl. mask) = the module's second return value.
    qk_ref[...] = s

    # Online softmax update.
    m_prev = m_sc[...]
    m_new = jnp.maximum(m_prev, jnp.max(s, axis=-1, keepdims=True))
    alpha = jnp.exp(m_prev - m_new)
    p = jnp.exp(s - m_new)
    l_sc[...] = alpha * l_sc[...] + jnp.sum(p, axis=-1, keepdims=True)
    pv = jax.lax.dot_general(                      # p @ v -> (Tq, hd) f32
        p.astype(MATMUL_DTYPE), v.astype(MATMUL_DTYPE),
        (((1,), (0,)), ((), ())),
        preferred_element_type=jnp.float32)
    acc_sc[...] = alpha * acc_sc[...] + pv
    m_sc[...] = m_new

    @pl.when(ki == pl.num_programs(3) - 1)
    def _():
        inv_l = pl.reciprocal(l_sc[...], approx=True)   # EUP, off the VPU path
        wv_ref[...] = (acc_sc[...] * inv_l).astype(wv_ref.dtype)


def _flash_kernel_nomask(q_ref, k_ref, v_ref, wv_ref, qk_ref,
                         m_sc, l_sc, acc_sc, **kw):
    _flash_body(q_ref, k_ref, v_ref, None, wv_ref, qk_ref,
                m_sc, l_sc, acc_sc, **kw)


def _flash_kernel_dense(q_ref, k_ref, v_ref, mask_ref, wv_ref, qk_ref,
                        m_sc, l_sc, acc_sc, **kw):
    _flash_body(q_ref, k_ref, v_ref, mask_ref[...], wv_ref, qk_ref,
                m_sc, l_sc, acc_sc, **kw)


def flash_attention(q, k, v, mask_arr, mask_mode, *, scale):
    """q/k/v: (B, H, T, hd) f32.  Returns wv (B,H,T,hd) and qk (B,H,T,T) f32."""
    B, H, T, hd = q.shape
    tq = _pick_tile(T, (256, 128))
    tk = _pick_tile(T, (256, 128))        # multiple of 128 when possible -> lane-dense qk writes
    grid = (B, H, T // tq, T // tk)

    in_specs = [
        pl.BlockSpec((None, None, tq, hd), lambda b, h, qi, ki: (b, h, qi, 0)),
        pl.BlockSpec((None, None, tk, hd), lambda b, h, qi, ki: (b, h, ki, 0)),
        pl.BlockSpec((None, None, tk, hd), lambda b, h, qi, ki: (b, h, ki, 0)),
    ]
    args = [q, k, v]
    if mask_mode == "dense":
        in_specs.append(pl.BlockSpec((tq, tk), lambda b, h, qi, ki: (qi, ki)))
        args.append(mask_arr)
        kernel_fn = _flash_kernel_dense
    else:
        kernel_fn = _flash_kernel_nomask

    kernel = functools.partial(kernel_fn, scale=scale, tq=tq, tk=tk,
                               mask_mode=mask_mode)

    flops = 4 * B * H * T * T * hd                    # QK^T + PV
    transcendentals = B * H * T * T                   # exp
    bytes_accessed = 4 * (3 * B * H * T * hd + B * H * T * hd + B * H * T * T)

    wv, qk = pl.pallas_call(
        kernel,
        out_shape=(jax.ShapeDtypeStruct((B, H, T, hd), jnp.float32),
                   jax.ShapeDtypeStruct((B, H, T, T), jnp.float32)),
        grid=grid,
        in_specs=in_specs,
        out_specs=(
            pl.BlockSpec((None, None, tq, hd), lambda b, h, qi, ki: (b, h, qi, 0)),
            pl.BlockSpec((None, None, tq, tk), lambda b, h, qi, ki: (b, h, qi, ki)),
        ),
        scratch_shapes=[
            pltpu.VMEM((tq, 1), jnp.float32),    # running max
            pltpu.VMEM((tq, 1), jnp.float32),    # running denom
            pltpu.VMEM((tq, hd), jnp.float32),   # running numerator
        ],
        compiler_params=pltpu.CompilerParams(
            dimension_semantics=("parallel", "parallel", "parallel", "arbitrary"),
            vmem_limit_bytes=VMEM_LIMIT),
        cost_estimate=pl.CostEstimate(
            flops=flops, transcendentals=transcendentals,
            bytes_accessed=bytes_accessed),
    )(*args)
    return wv, qk


# ---------------------------------------------------------------------------
# Module-level forward (Pallas-backed).
# ---------------------------------------------------------------------------
def multi_head_attention(x, params, mask=None, causal=False):
    """Forward of Whisper MultiHeadAttention (self-attention). Returns (out, qk)."""
    B, T, D = x.shape
    H = params['n_head']
    hd = D // H
    N = B * T

    # Fused QKV projection (key has no bias).  In production the fused weight
    # would be pre-packed; the concat here is cheap one-time layout plumbing.
    wqkv = jnp.concatenate([params['wq'], params['wk'], params['wv']], axis=0)
    bqkv = jnp.concatenate(
        [params['bq'], jnp.zeros((1, D), jnp.float32), params['bv']], axis=1)

    qkv = linear(x.reshape(N, D), wqkv, bqkv)          # (N, 3D) f32

    def split_heads(t):                                # (N, D) -> (B, H, T, hd)
        return t.reshape(B, T, H, hd).transpose(0, 2, 1, 3)

    q = split_heads(qkv[:, :D])
    k = split_heads(qkv[:, D:2 * D])
    v = split_heads(qkv[:, 2 * D:])

    if causal:
        mask_mode, mask_arr = "causal", None
    elif mask is not None:
        mask_mode, mask_arr = "dense", jnp.asarray(mask[:T, :T], jnp.float32)
    else:
        mask_mode, mask_arr = "none", None

    wv, qk = flash_attention(q, k, v, mask_arr, mask_mode,
                             scale=float(hd) ** -0.5)

    # Single output projection with contraction K = D (heads re-concatenated
    # via one wrapper-side transpose+reshape, layout plumbing only).
    wv2 = wv.transpose(0, 2, 1, 3).reshape(N, D)
    out = linear(wv2, params['wo'], params['bo']).reshape(B, T, D)
    return out, qk


def init_params(key, n_state, n_head):
    ks = jax.random.split(key, 7)
    s = 0.02
    return {
        'n_head': n_head,
        'wq': s * jax.random.normal(ks[0], (n_state, n_state), jnp.float32),
        'bq': s * jax.random.normal(ks[1], (1, n_state), jnp.float32),
        'wk': s * jax.random.normal(ks[2], (n_state, n_state), jnp.float32),
        'wv': s * jax.random.normal(ks[3], (n_state, n_state), jnp.float32),
        'bv': s * jax.random.normal(ks[4], (1, n_state), jnp.float32),
        'wo': s * jax.random.normal(ks[5], (n_state, n_state), jnp.float32),
        'bo': s * jax.random.normal(ks[6], (1, n_state), jnp.float32),
    }


def reference(x, p, mask):
    """Plain-JAX transcription of the PyTorch forward (f32), for verification."""
    B, T, D = x.shape
    H = p['n_head']
    hd = D // H
    q = x @ p['wq'].T + p['bq'][0]
    k = x @ p['wk'].T
    v = x @ p['wv'].T + p['bv'][0]
    scale = hd ** (-0.25)
    qh = q.reshape(B, T, H, hd).transpose(0, 2, 1, 3) * scale
    kh = k.reshape(B, T, H, hd).transpose(0, 2, 3, 1) * scale
    vh = v.reshape(B, T, H, hd).transpose(0, 2, 1, 3)
    qk = jnp.einsum('bhqd,bhdk->bhqk', qh, kh)
    if mask is not None:
        qk = qk + mask[:T, :T]
    w = jax.nn.softmax(qk, axis=-1)
    wv = jnp.einsum('bhqk,bhkd->bhqd', w, vh).transpose(0, 2, 1, 3).reshape(B, T, D)
    out = wv @ p['wo'].T + p['bo'][0]
    return out, qk


if __name__ == "__main__":
    B, T, D, H = 2, 8, 32, 4          # n_ctx=8, n_state=32, n_head=4

    key = jax.random.PRNGKey(0)
    kx, kp = jax.random.split(key)
    x = jax.random.normal(kx, (B, T, D), jnp.float32)
    params = init_params(kp, D, H)

    # Whisper causal additive mask (-1e4 above the diagonal).
    mask = jnp.triu(jnp.full((T, T), NEG_MASK, jnp.float32), k=1)

    # Path 1: causal mask generated in-kernel (no (T, T) HBM mask input).
    out_c, qk_c = multi_head_attention(x, params, causal=True)
    # Path 2: explicit dense additive mask, tiled by BlockSpec.
    out_d, qk_d = multi_head_attention(x, params, mask=mask)
    out_c, qk_c, out_d, qk_d = jax.block_until_ready((out_c, qk_c, out_d, qk_d))

    out_ref, qk_ref = reference(x, params, mask)

    # bf16 MXU operands (f32 accumulation) + approx reciprocal => bf16-level tolerance.
    tol = dict(rtol=2e-2, atol=3e-3)
    np.testing.assert_allclose(np.asarray(out_c), np.asarray(out_ref), **tol)
    np.testing.assert_allclose(np.asarray(qk_c), np.asarray(qk_ref), **tol)
    np.testing.assert_allclose(np.asarray(out_d), np.asarray(out_ref), **tol)
    np.testing.assert_allclose(np.asarray(qk_d), np.asarray(qk_ref), **tol)

    print("KERNEL_OK")
</pallas_src>

<mosaic_0001>
module attributes {stable_mosaic.version = 11 : i64} {
  func.func @_linear_kernel(%arg0: i32, %arg1: memref<16x32xf32, #tpu.memory_space<vmem>>, %arg2: memref<96x32xf32, #tpu.memory_space<vmem>>, %arg3: memref<1x96xf32, #tpu.memory_space<vmem>>, %arg4: memref<16x96xf32, #tpu.memory_space<vmem>>) attributes {dimension_semantics = [#tpu.dimension_semantics<parallel>], iteration_bounds = array<i64: 1>, scalar_prefetch = 0 : i64, scratch_operands = 0 : i64, tpu.core_type = #tpu.core_type<tc>, window_params = [{transform_indices = @transform_0, window_bounds = array<i64: 16, 32>}, {pipeline_mode = #tpu.pipeline_mode<synchronous>, transform_indices = @transform_1, window_bounds = array<i64: 96, 32>}, {pipeline_mode = #tpu.pipeline_mode<synchronous>, transform_indices = @transform_2, window_bounds = array<i64: 1, 96>}, {transform_indices = @transform_3, window_bounds = array<i64: 16, 96>}]} {
    %c0 = arith.constant 0 : index
    %c0_0 = arith.constant 0 : index
    %0 = vector.load %arg1[%c0, %c0_0] : memref<16x32xf32, #tpu.memory_space<vmem>>, vector<16x32xf32>
    %1 = arith.truncf %0 : vector<16x32xf32> to vector<16x32xbf16>
    %c0_1 = arith.constant 0 : index
    %c0_2 = arith.constant 0 : index
    %2 = vector.load %arg2[%c0_1, %c0_2] : memref<96x32xf32, #tpu.memory_space<vmem>>, vector<96x32xf32>
    %3 = arith.truncf %2 : vector<96x32xf32> to vector<96x32xbf16>
    %cst = arith.constant dense<0.000000e+00> : vector<16x96xf32>
    %4 = tpu.matmul %1, %3, %cst {dimension_numbers = #tpu.dot_dimension_numbers<[1], [1], [0], [0], [0, 0, 1, 0], [], []>} : vector<16x32xbf16>, vector<96x32xbf16>, vector<16x96xf32> -> vector<16x96xf32>
    %c0_3 = arith.constant 0 : index
    %c0_4 = arith.constant 0 : index
    %5 = vector.load %arg3[%c0_3, %c0_4] : memref<1x96xf32, #tpu.memory_space<vmem>>, vector<1x96xf32>
    %6 = vector.broadcast %5 : vector<1x96xf32> to vector<16x96xf32>
    %7 = arith.addf %4, %6 : vector<16x96xf32>
    %c0_5 = arith.constant 0 : index
    %c0_6 = arith.constant 0 : index
    %8 = vector.load %arg4[%c0_5, %c0_6] : memref<16x96xf32, #tpu.memory_space<vmem>>, vector<16x96xf32>
    tpu.vector_store %arg4[%c0_5, %c0_6], %7 {strides = array<i32>} : memref<16x96xf32, #tpu.memory_space<vmem>>, vector<16x96xf32>,
    return
  }
  func.func @transform_0(%arg0: i32) -> (i32, i32) {
    %c0_i32 = arith.constant 0 : i32
    %c0_i32_0 = arith.constant 0 : i32
    return %arg0, %c0_i32 : i32, i32
  }
  func.func @transform_1(%arg0: i32) -> (i32, i32) {
    %c0_i32 = arith.constant 0 : i32
    %c0_i32_0 = arith.constant 0 : i32
    %c0_i32_1 = arith.constant 0 : i32
    return %c0_i32, %c0_i32_0 : i32, i32
  }
  func.func @transform_2(%arg0: i32) -> (i32, i32) {
    %c0_i32 = arith.constant 0 : i32
    %c0_i32_0 = arith.constant 0 : i32
    %c0_i32_1 = arith.constant 0 : i32
    return %c0_i32, %c0_i32_0 : i32, i32
  }
  func.func @transform_3(%arg0: i32) -> (i32, i32) {
    %c0_i32 = arith.constant 0 : i32
    %c0_i32_0 = arith.constant 0 : i32
    return %arg0, %c0_i32 : i32, i32
  }
}

</mosaic_0001>

<llo_original>
// kernel: tpu_custom_call.1
$region0: #{tpu_custom_call.1}
  #allocation0 [shape = 'u32[]', space=smem, size = 0x4, offset = 0x4, fixed_abs, tag = 'smem constant byte address 0x4 - core index']
  #allocation1 [shape = 'u32[144,128]{1,0:T(1,128)}', space=vmem, size = 0x12000, scoped, tag = 'internal scratch']
  %s0 = inlined_call_operand.vmem [shape: f32[16,32], index: 0, kind: input, shape index: {}]
  %s1 = inlined_call_operand.vmem [shape: f32[96,32], index: 1, kind: input, shape index: {}]
  %s2 = inlined_call_operand.vmem [shape: f32[1,96], index: 2, kind: input, shape index: {}]
  %s3 = inlined_call_operand.hbm [shape: f32[16,96], index: 3, kind: output, shape index: {}]
  %s4 = sld [smem:[#allocation0]]
  $region22: #{tpu_custom_call.1} parent=0
    _
  %s6 = ssub.s32 1, %s4
  %s7 = scalar_select 0, %s6, %s4
  $region1: #{tpu_custom_call.1} parent=0
    #allocation2 [shape = 'u8[8192]{0}', space=vmem, size = 0x2000, scoped, tag = 'output window, operand 0, single buffered']
    #allocation3 [shape = 's32[1]{0}', space=sflag, size = 0x4, scoped, tag = 'scoped memory for tpu_custom_call.1']
    %8 = vsyncpa [#allocation3], 0
    // Predicated region
    $region2: #{tpu_custom_call.1} parent=1 // pred_check
      _
    $region3: #{tpu_custom_call.1} parent=1 // pred_check_branch
      %10 = sbr.rel (0) target = $region5
    $region4: #{tpu_custom_call.1} parent=1 // pred_region
      _
    $region5: #{tpu_custom_call.1} parent=1 // pred_fallthru
      _
    // Predicated region
    $region6: #{tpu_custom_call.1} parent=1 // pred_check
      _
    $region7: #{tpu_custom_call.1} parent=1 // pred_check_branch
      %12 = sbr.rel (0) target = $region9
    $region8: #{tpu_custom_call.1} parent=1 // pred_region
      _
    $region9: #{tpu_custom_call.1} parent=1 // pred_fallthru
      _
    // Predicated region
    $region10: #{tpu_custom_call.1} parent=1 // pred_check
      _
    $region11: #{tpu_custom_call.1} parent=1 // pred_check_branch
      %14 = sbr.rel (0) target = $region13
    $region12: #{tpu_custom_call.1} parent=1 // pred_region
      _
    $region13: #{tpu_custom_call.1} parent=1 // pred_fallthru
      _
    %v16 = vld [vmem:[%s0] sm:$0xff]
    %v17 = vld [vmem:[%s0 + $0x8] sm:$0xff]
    %v18 = vpack.c.bf16 %v17, %v16
    %v19 = vld [vmem:[%s1] sm:$0xff]
    %v20 = vld [vmem:[%s1 + $0x8] sm:$0xff]
    %v21 = vld [vmem:[%s1 + $0x10] sm:$0xff]
    %v22 = vld [vmem:[%s1 + $0x18] sm:$0xff]
    %v23 = vld [vmem:[%s1 + $0x20] sm:$0xff]
    %v24 = vld [vmem:[%s1 + $0x28] sm:$0xff]
    %v25 = vld [vmem:[%s1 + $0x30] sm:$0xff]
    %v26 = vld [vmem:[%s1 + $0x38] sm:$0xff]
    %v27 = vld [vmem:[%s1 + $0x40] sm:$0xff]
    %v28 = vld [vmem:[%s1 + $0x48] sm:$0xff]
    %v29 = vld [vmem:[%s1 + $0x50] sm:$0xff]
    %v30 = vld [vmem:[%s1 + $0x58] sm:$0xff]
    %v31 = vpack.c.bf16 %v20, %v19
    %v32 = vpack.c.bf16 %v22, %v21
    %v33 = vpack.c.bf16 %v24, %v23
    %v34 = vpack.c.bf16 %v26, %v25
    %v35 = vpack.c.bf16 %v28, %v27
    %v36 = vpack.c.bf16 %v30, %v29
    %v37 = vld [vmem:[%s2] sm:$0x1]
    %v39 = vlaneseq
    %v40 = vshrl.u32 %v39, 7
    %v41 = vsub.s32 0, %v40
    %v42 = vrot.slane %v37, %v41
    %vm44 = vcmask 261120
    %v46 = vsel %vm44, %v18, 0
    %v49 = vsel %vm44, %v31, 0
    %v52 = vsel %vm44, %v32, 0
    %v55 = vsel %vm44, %v33, 0
    %v58 = vsel %vm44, %v34, 0
    %v61 = vsel %vm44, %v35, 0
    %v64 = vsel %vm44, %v36, 0
    %66 = vmatprep.subr.bf16.mxu0 0
    %67 = vmatpush1.bf16.xpose.msra.mxu0 0
    %68 = vmatprep.subr.bf16.mxu0 0
    %69 = vmatpush1.bf16.xpose.msra.mxu0 0
    %70 = vmatprep.subr.bf16.mxu0 0
    %71 = vmatpush1.bf16.xpose.msra.mxu0 %v64
    %72 = vmatprep.subr.bf16.mxu0 0
    %73 = vmatpush1.bf16.xpose.msra.mxu0 %v61
    %74 = vmatprep.subr.bf16.mxu0 0
    %75 = vmatpush1.bf16.xpose.msra.mxu0 %v58
    %76 = vmatprep.subr.bf16.mxu0 0
    %77 = vmatpush1.bf16.xpose.msra.mxu0 %v55
    %78 = vmatprep.subr.bf16.mxu0 0
    %79 = vmatpush1.bf16.xpose.msra.mxu0 %v52
    %80 = vmatprep.subr.bf16.mxu0 0
    %81 = vmatpush1.bf16.xpose.msra.mxu0 %v49
    %82 = vmatprep.subr.bf16.mxu0 0
    %83 = vmatpush2.bf16.xpose.msra.mxu0 0
    %84 = vmatprep.subr.bf16.mxu0 0
    %85 = vmatpush2.bf16.xpose.msra.mxu0 0
    %86 = vmatprep.subr.bf16.mxu0 0
    %87 = vmatpush2.bf16.xpose.msra.mxu0 0
    %88 = vmatprep.subr.bf16.mxu0 0
    %89 = vmatpush2.bf16.xpose.msra.mxu0 0
    %90 = vmatprep.subr.bf16.mxu0 0
    %91 = vmatpush2.bf16.xpose.msra.mxu0 0
    %92 = vmatprep.subr.bf16.mxu0 0
    %93 = vmatpush2.bf16.xpose.msra.mxu0 0
    %94 = vmatprep.subr.bf16.mxu0 0
    %95 = vmatpush2.bf16.xpose.msra.mxu0 0
    %96 = vmatprep.subr.bf16.mxu0 0
    %97 = vmatpush2.bf16.xpose.msra.mxu0 0
    %98 = vmatprep.mubr.bf16.mxu0 0
    %99 = vmatmul.mubr.bf16.gmra.mxu0 %v46
    %v100 = vpop.f32.mrf.mxu0
    %v101 = vadd.f32 %v42, %v100
    %v102 = vpop.f32.mrf.mxu0
    %v103 = vpop.f32.mrf.mxu0
    %v104 = vadd.f32 %v42, %v103
    %v105 = vpop.f32.mrf.mxu0
    %106 = vdwg.mxu0
    %vm107 = vcmask 785408
    %108 = vst.msk [vmem:[#allocation2] sm:$0xff] %vm107, %v101
    %109 = vst.msk [vmem:[#allocation2 + $0x8] sm:$0xff] %vm107, %v104
    // Predicated region
    $region14: #{tpu_custom_call.1} parent=1 // pred_check
      _
    $region15: #{tpu_custom_call.1} parent=1 // pred_check_branch
      %111 = sbr.rel (0) target = $region17
    $region16: #{tpu_custom_call.1} parent=1 // pred_region
      %s113 = ssub.s32 256, 256
      %114 = vsyncadd [#allocation3], %s113
      %s115 = sshll.u32 [#allocation2], 4
      %s116 = int_to_ptr.vmem [resolvable:$true] %s115
      %121 = dma.vmem_to_hbm [thread:$0]  %s116, 256, %s3, [#allocation3], 128, 128, 8
    $region17: #{tpu_custom_call.1} parent=1 // pred_fallthru
      _
    // Predicated region
    $region18: #{tpu_custom_call.1} parent=1 // pred_check
      _
    $region19: #{tpu_custom_call.1} parent=1 // pred_check_branch
      %123 = sbr.rel (0) target = $region21
    $region20: #{tpu_custom_call.1} parent=1 // pred_region
      %124 = dma.done [#allocation3], 256
    $region21: #{tpu_custom_call.1} parent=1 // pred_fallthru
      _
    %125 = vsyncpa [#allocation3], 1

</llo_original>
